<compile_context>
chip_gen: v5e
topology: v5e:2x2
jax: 0.10.0
libtpu: 0.0.40
codegen_flags: <defaults>
</compile_context>

<pallas_src>
import math

import jax
import jax.numpy as jnp
from jax.experimental import pallas as pl
from jax.experimental.pallas import tpu as pltpu


_LANE = 128                     # vreg lane width
_SUBLANE = 8                    # vreg sublane count
_TILE_BYTES = 2 * 1024 * 1024   # per-tile-buffer budget (x ~4 when double-buffered in+out)


def _build_pe(in_channels: int, max_length: int) -> jnp.ndarray:
    """Deterministic sinusoidal positional-encoding table, shape (max_length, C)."""
    position = jnp.arange(0, max_length, dtype=jnp.float32)[:, None]          # (L, 1)
    div_term = jnp.exp(
        jnp.arange(0, in_channels, 2, dtype=jnp.float32)
        * -(math.log(10000.0) / in_channels)
    )                                                                          # (ceil(C/2),)
    sin_part = jnp.sin(position * div_term)
    cos_part = jnp.cos(position * div_term)
    pe = jnp.zeros((max_length, in_channels), dtype=jnp.float32)
    # Guard odd C (PyTorch original would shape-error); slice to the exact column counts.
    pe = pe.at[:, 0::2].set(sin_part[:, : (in_channels + 1) // 2])
    pe = pe.at[:, 1::2].set(cos_part[:, : in_channels // 2])
    return pe                                                                  # (max_length, C)


def _pick_block(full: int, unit: int, max_size: int) -> int:
    """Largest multiple of `unit` that divides `full` and is <= max_size.

    Falls back to `full` when the whole dim fits the budget or is not a
    multiple of `unit` (block == full array dim always satisfies the (8,128) rule).
    """
    if full <= max_size:
        return full
    if full % unit != 0:
        return full
    best = unit
    t = unit
    while t <= max_size:
        if full % t == 0:
            best = t
        t += unit
    return best


def _add_pe_kernel(x_ref, pe_ref, o_ref):
    # x_ref/o_ref: (TB, TL) lane-dense tile; pe_ref: (1, TL) broadcast over rows.
    o_ref[...] = x_ref[...] + pe_ref[...]


def positional_encoding_forward(x: jnp.ndarray, pe: jnp.ndarray) -> jnp.ndarray:
    """x: (B, T, C); pe: (max_length, C) with T <= max_length. Returns x + pe[:T]."""
    B, T, C = x.shape
    L = T * C

    # Layout plumbing (free reshapes): lane-dense 2D views.
    x_flat = x.reshape(B, L)
    pe_flat = pe[:T, :].astype(x.dtype).reshape(1, L)   # pre-cast to activation dtype

    itemsize = jnp.dtype(x.dtype).itemsize
    # Lane tile: multiple of 128 (or the full L), capped so a row of the tile stays modest.
    tl = _pick_block(L, _LANE, max_size=max(_LANE, min(L, 8192)))
    # Row tile: multiple of 8 (or the full B), capped by the per-buffer VMEM budget.
    row_budget = max(_SUBLANE, _TILE_BYTES // max(1, tl * itemsize))
    tb = _pick_block(B, _SUBLANE, max_size=row_budget)

    grid = (B // tb, L // tl)

    # TODO(synk): for tiny inputs (a few KiB, like the demo shape) a plain `x + pe`
    # fused by XLA beats any Pallas launch; a size-threshold dispatch would skip the
    # kernel there.  Kept unconditional here so the kernel path is exercised.

    out_flat = pl.pallas_call(
        _add_pe_kernel,
        out_shape=jax.ShapeDtypeStruct((B, L), x.dtype),
        grid_spec=pltpu.PrefetchScalarGridSpec(
            num_scalar_prefetch=0,
            grid=grid,
            in_specs=[
                pl.BlockSpec((tb, tl), lambda i, j: (i, j)),   # x tile
                pl.BlockSpec((1, tl), lambda i, j: (0, j)),    # shared pe tile (row-broadcast)
            ],
            out_specs=pl.BlockSpec((tb, tl), lambda i, j: (i, j)),
        ),
        compiler_params=pltpu.CompilerParams(
            dimension_semantics=("parallel", "parallel"),
        ),
    )(x_flat, pe_flat)

    return out_flat.reshape(B, T, C)


if __name__ == "__main__":
    key = jax.random.PRNGKey(0)

    # --- Test 1: module config from the spec (in_channels=32, max_length=16) ---
    in_channels, max_length = 32, 16
    pe = _build_pe(in_channels, max_length)
    B, T = 2, 8                                   # T <= max_length
    k1, k2 = jax.random.split(key)
    x = jax.random.normal(k1, (B, T, in_channels), dtype=jnp.float32)

    out = positional_encoding_forward(x, pe)
    out = jax.block_until_ready(out)
    ref = x + pe[None, :T, :]
    assert out.shape == x.shape
    assert jnp.allclose(out, ref, atol=1e-6), "mismatch vs reference (test 1)"

    # --- Test 2: lane count not a multiple of 128 (exercises full-dim fallback) ---
    in_channels2, max_length2 = 24, 10
    pe2 = _build_pe(in_channels2, max_length2)
    x2 = jax.random.normal(k2, (3, 5, in_channels2), dtype=jnp.float32)

    out2 = positional_encoding_forward(x2, pe2)
    out2 = jax.block_until_ready(out2)
    ref2 = x2 + pe2[None, :5, :]
    assert out2.shape == x2.shape
    assert jnp.allclose(out2, ref2, atol=1e-6), "mismatch vs reference (test 2)"

    print("KERNEL_OK")
</pallas_src>

<mosaic_0001>
module attributes {stable_mosaic.version = 11 : i64} {
  func.func @_add_pe_kernel(%arg0: i32, %arg1: i32, %arg2: memref<2x256xf32, #tpu.memory_space<vmem>>, %arg3: memref<1x256xf32, #tpu.memory_space<vmem>>, %arg4: memref<2x256xf32, #tpu.memory_space<vmem>>) attributes {dimension_semantics = [#tpu.dimension_semantics<parallel>, #tpu.dimension_semantics<parallel>], iteration_bounds = array<i64: 1, 1>, scalar_prefetch = 0 : i64, scratch_operands = 0 : i64, tpu.core_type = #tpu.core_type<tc>, window_params = [{transform_indices = @transform_0, window_bounds = array<i64: 2, 256>}, {transform_indices = @transform_1, window_bounds = array<i64: 1, 256>}, {transform_indices = @transform_2, window_bounds = array<i64: 2, 256>}]} {
    %c0 = arith.constant 0 : index
    %c0_0 = arith.constant 0 : index
    %0 = vector.load %arg2[%c0, %c0_0] : memref<2x256xf32, #tpu.memory_space<vmem>>, vector<2x256xf32>
    %c0_1 = arith.constant 0 : index
    %c0_2 = arith.constant 0 : index
    %1 = vector.load %arg3[%c0_1, %c0_2] : memref<1x256xf32, #tpu.memory_space<vmem>>, vector<1x256xf32>
    %2 = vector.broadcast %1 : vector<1x256xf32> to vector<2x256xf32>
    %3 = arith.addf %0, %2 : vector<2x256xf32>
    %c0_3 = arith.constant 0 : index
    %c0_4 = arith.constant 0 : index
    %4 = vector.load %arg4[%c0_3, %c0_4] : memref<2x256xf32, #tpu.memory_space<vmem>>, vector<2x256xf32>
    tpu.vector_store %arg4[%c0_3, %c0_4], %3 {strides = array<i32>} : memref<2x256xf32, #tpu.memory_space<vmem>>, vector<2x256xf32>,
    return
  }
  func.func @transform_0(%arg0: i32, %arg1: i32) -> (i32, i32) {
    %c0_i32 = arith.constant 0 : i32
    return %arg0, %arg1 : i32, i32
  }
  func.func @transform_1(%arg0: i32, %arg1: i32) -> (i32, i32) {
    %c0_i32 = arith.constant 0 : i32
    %c0_i32_0 = arith.constant 0 : i32
    return %c0_i32, %arg1 : i32, i32
  }
  func.func @transform_2(%arg0: i32, %arg1: i32) -> (i32, i32) {
    %c0_i32 = arith.constant 0 : i32
    return %arg0, %arg1 : i32, i32
  }
}

</mosaic_0001>

<llo_original>
// kernel: tpu_custom_call.1
$region0: #{tpu_custom_call.1}
  #allocation0 [shape = 'u32[]', space=smem, size = 0x4, offset = 0x4, fixed_abs, tag = 'smem constant byte address 0x4 - core index']
  #allocation1 [shape = 'u32[72,128]{1,0:T(1,128)}', space=vmem, size = 0x9000, scoped, tag = 'internal scratch']
  %s0 = inlined_call_operand.hbm [shape: f32[2,256], index: 0, kind: input, shape index: {}]
  %s1 = inlined_call_operand.hbm [shape: f32[1,256], index: 1, kind: input, shape index: {}]
  %s2 = inlined_call_operand.hbm [shape: f32[2,256], index: 2, kind: output, shape index: {}]
  %s3 = sld [smem:[#allocation0]]
  $region26: #{tpu_custom_call.1} parent=0
    _
  %s5 = ssub.s32 1, %s3
  %s6 = scalar_select 0, %s5, %s3
  $region1: #{tpu_custom_call.1} parent=0
    #allocation2 [shape = 'u8[2048]{0}', space=vmem, size = 0x800, scoped, tag = 'input window, operand 0, single buffered']
    #allocation3 [shape = 's32[1]{0}', space=sflag, size = 0x4, scoped, tag = 'scoped memory for tpu_custom_call.1']
    #allocation4 [shape = 's32[1]{0}', space=sflag, size = 0x4, scoped, tag = 'scoped memory for tpu_custom_call.1']
    #allocation5 [shape = 'u8[1024]{0}', space=vmem, size = 0x400, scoped, tag = 'input window, operand 1, single buffered']
    #allocation6 [shape = 's32[1]{0}', space=sflag, size = 0x4, scoped, tag = 'scoped memory for tpu_custom_call.1']
    #allocation7 [shape = 'u8[2048]{0}', space=vmem, size = 0x800, scoped, tag = 'output window, operand 0, single buffered']
    %7 = vsyncpa [#allocation3], 0
    %8 = vsyncpa [#allocation6], 0
    %9 = vsyncpa [#allocation4], 0
    // Predicated region
    $region2: #{tpu_custom_call.1} parent=1 // pred_check
      _
    $region3: #{tpu_custom_call.1} parent=1 // pred_check_branch
      %11 = sbr.rel (0) target = $region5
    $region4: #{tpu_custom_call.1} parent=1 // pred_region
      %13 = vsyncadd [#allocation3], 0
      %s15 = sshll.u32 %s0, 4
      %s16 = int_to_ptr.hbm [resolvable:$true] %s15
      %s17 = sshll.u32 [#allocation2], 4
      %s18 = int_to_ptr.vmem [resolvable:$true] %s17
      %20 = dma.hbm_to_vmem [thread:$0]  %s16, 64, %s18, [#allocation3]
    $region5: #{tpu_custom_call.1} parent=1 // pred_fallthru
      _
    // Predicated region
    $region6: #{tpu_custom_call.1} parent=1 // pred_check
      _
    $region7: #{tpu_custom_call.1} parent=1 // pred_check_branch
      %22 = sbr.rel (0) target = $region9
    $region8: #{tpu_custom_call.1} parent=1 // pred_region
      %24 = vsyncadd [#allocation6], 0
      %s26 = sshll.u32 %s1, 4
      %s27 = int_to_ptr.hbm [resolvable:$true] %s26
      %s28 = sshll.u32 [#allocation5], 4
      %s29 = int_to_ptr.vmem [resolvable:$true] %s28
      %31 = dma.hbm_to_vmem [thread:$0]  %s27, 32, %s29, [#allocation6]
    $region9: #{tpu_custom_call.1} parent=1 // pred_fallthru
      _
    // Predicated region
    $region10: #{tpu_custom_call.1} parent=1 // pred_check
      _
    $region11: #{tpu_custom_call.1} parent=1 // pred_check_branch
      %33 = sbr.rel (0) target = $region13
    $region12: #{tpu_custom_call.1} parent=1 // pred_region
      %35 = dma.done [#allocation3], 64
    $region13: #{tpu_custom_call.1} parent=1 // pred_fallthru
      _
    // Predicated region
    $region14: #{tpu_custom_call.1} parent=1 // pred_check
      _
    $region15: #{tpu_custom_call.1} parent=1 // pred_check_branch
      %37 = sbr.rel (0) target = $region17
    $region16: #{tpu_custom_call.1} parent=1 // pred_region
      %39 = dma.done [#allocation6], 32
    $region17: #{tpu_custom_call.1} parent=1 // pred_fallthru
      _
    %v40 = vld [vmem:[#allocation2] sm:$0xf]
    %v41 = vld [vmem:[#allocation5] sm:$0x3]
    %v43 = vperm.slane %v41, 0
    %v44 = vperm.slane %v41, 1
    %v45 = vrot.slane %v44, 6
    %vm46 = vcmask 1041408
    %v47 = vsel %vm46, %v43, %v45
    %v49 = vadd.f32 %v40, %v47
    %50 = vst [vmem:[#allocation7] sm:$0xf] %v49
    // Predicated region
    $region18: #{tpu_custom_call.1} parent=1 // pred_check
      _
    $region19: #{tpu_custom_call.1} parent=1 // pred_check_branch
      %52 = sbr.rel (0) target = $region21
    $region20: #{tpu_custom_call.1} parent=1 // pred_region
      %54 = vsyncadd [#allocation4], 0
      %s56 = sshll.u32 [#allocation7], 4
      %s57 = int_to_ptr.vmem [resolvable:$true] %s56
      %s58 = sshll.u32 %s2, 4
      %s59 = int_to_ptr.hbm [resolvable:$true] %s58
      %61 = dma.vmem_to_hbm [thread:$0]  %s57, 64, %s59, [#allocation4]
    $region21: #{tpu_custom_call.1} parent=1 // pred_fallthru
      _
    // Predicated region
    $region22: #{tpu_custom_call.1} parent=1 // pred_check
      _
    $region23: #{tpu_custom_call.1} parent=1 // pred_check_branch
      %63 = sbr.rel (0) target = $region25
    $region24: #{tpu_custom_call.1} parent=1 // pred_region
      %65 = dma.done [#allocation4], 64
    $region25: #{tpu_custom_call.1} parent=1 // pred_fallthru
      _
    %66 = vsyncpa [#allocation3], 1
    %67 = vsyncpa [#allocation6], 1
    %68 = vsyncpa [#allocation4], 1

</llo_original>
